<compile_context>
chip_gen: v6e
topology: v6e:2x2x1
jax: 0.10.0
libtpu: 0.0.40
codegen_flags: <defaults>
</compile_context>

<pallas_src>
import jax
import jax.numpy as jnp
from jax.experimental import pallas as pl
from jax.experimental.pallas import tpu as pltpu


def _mlp_head_kernel(x_ref, w1_ref, b1_ref, w2_ref, b2_ref, w3_ref, b3_ref,
                     o_ref):
    # x_ref: (TB, 768) f32 tile of pooled BERT output; cast to bf16 in-kernel
    # (VPU) so HBM only carries the f32 once.
    x = x_ref[...].astype(jnp.bfloat16)

    # fc1 + ReLU   (768 -> 128)   bf16 MXU matmul, f32 accumulation.
    h1 = jnp.dot(x, w1_ref[...], preferred_element_type=jnp.float32)
    h1 = jnp.maximum(h1 + b1_ref[...], 0.0)

    # fc2 + ReLU   (128 -> 128)
    h2 = jnp.dot(h1.astype(jnp.bfloat16), w2_ref[...],
                 preferred_element_type=jnp.float32)
    h2 = jnp.maximum(h2 + b2_ref[...], 0.0)

    # fc3          (128 -> 2)  narrow output; writeback is only 8 B/row.
    out = jnp.dot(h2.astype(jnp.bfloat16), w3_ref[...],
                  preferred_element_type=jnp.float32)
    o_ref[...] = (out + b3_ref[...]).astype(o_ref.dtype)


def _round_up(x, m):
    return ((x + m - 1) // m) * m


def bert_regressor_head(cls_hs, params, *, tb=1024):
    """Pallas forward for the BertRegressor head.

    cls_hs : (B, 768) float32 pooled BERT output.
    params : dict with w1 (768,128) bf16, b1 (1,128) f32, w2 (128,128) bf16,
             b2 (1,128) f32, w3 (128,2) bf16, b3 (1,2) f32
             (weights stored as (in, out), pre-converted once at init).
    """
    B, H = cls_hs.shape
    assert H == 768

    # Adaptive tile: up to `tb` rows, multiple of 16, and never more than
    # ceil(B/2) (rounded up) so that the grid has >=2 steps whenever the
    # batch allows it — keeps both TensorCores busy on v7x megacore.
    tb_eff = max(16, min(tb, _round_up(pl.cdiv(B, 2), 16)))
    grid = (pl.cdiv(B, tb_eff),)

    w1, b1 = params["w1"], params["b1"]
    w2, b2 = params["w2"], params["b2"]
    w3, b3 = params["w3"], params["b3"]

    flops = 2 * B * (768 * 128 + 128 * 128 + 128 * 2)
    bytes_accessed = (B * 768 * 4                                  # x (f32)
                      + (768 * 128 + 128 * 128 + 128 * 2) * 2      # bf16 W
                      + (128 + 128 + 2) * 4                        # f32 biases
                      + B * 2 * 4)                                 # out (f32)

    out = pl.pallas_call(
        _mlp_head_kernel,
        out_shape=jax.ShapeDtypeStruct((B, 2), jnp.float32),
        grid_spec=pltpu.PrefetchScalarGridSpec(
            num_scalar_prefetch=0,
            grid=grid,
            in_specs=[
                pl.BlockSpec((tb_eff, 768), lambda i: (i, 0)),  # x tile (f32)
                pl.BlockSpec((768, 128), lambda i: (0, 0)),     # w1
                pl.BlockSpec((1, 128), lambda i: (0, 0)),       # b1
                pl.BlockSpec((128, 128), lambda i: (0, 0)),     # w2
                pl.BlockSpec((1, 128), lambda i: (0, 0)),       # b2
                pl.BlockSpec((128, 2), lambda i: (0, 0)),       # w3 (narrow)
                pl.BlockSpec((1, 2), lambda i: (0, 0)),         # b3 (narrow)
            ],
            out_specs=pl.BlockSpec((tb_eff, 2), lambda i: (i, 0)),
        ),
        compiler_params=pltpu.CompilerParams(
            dimension_semantics=("parallel",),
            vmem_limit_bytes=32 * 1024 * 1024,  # v5e default is only 16 MiB
        ),
        cost_estimate=pl.CostEstimate(
            flops=flops, transcendentals=0, bytes_accessed=bytes_accessed),
    )(cls_hs, w1, b1, w2, b2, w3, b3)

    return out


def init_params(key):
    """Deterministic init mimicking torch.nn.Linear defaults
    (uniform(-1/sqrt(fan_in), 1/sqrt(fan_in))), pre-converted to the kernel's
    storage format once (bf16 weights, f32 biases) — no per-call casts."""
    ks = jax.random.split(key, 6)

    def lin(kw, kb, fan_in, fan_out):
        bound = 1.0 / jnp.sqrt(fan_in)
        w = jax.random.uniform(kw, (fan_in, fan_out), jnp.float32,
                               minval=-bound, maxval=bound)
        b = jax.random.uniform(kb, (1, fan_out), jnp.float32,
                               minval=-bound, maxval=bound)
        return w.astype(jnp.bfloat16), b.astype(jnp.float32)

    w1, b1 = lin(ks[0], ks[1], 768, 128)
    w2, b2 = lin(ks[2], ks[3], 128, 128)
    w3, b3 = lin(ks[4], ks[5], 128, 2)
    return dict(w1=w1, b1=b1, w2=w2, b2=b2, w3=w3, b3=b3)


def reference_head(cls_hs, p):
    # Pure-JAX f32 reference (same math as the torch module's head).
    w1 = p["w1"].astype(jnp.float32)
    w2 = p["w2"].astype(jnp.float32)
    w3 = p["w3"].astype(jnp.float32)
    h1 = jnp.maximum(cls_hs @ w1 + p["b1"], 0.0)
    h2 = jnp.maximum(h1 @ w2 + p["b2"], 0.0)
    return h2 @ w3 + p["b3"]


if __name__ == "__main__":
    key = jax.random.PRNGKey(0)
    k_params, k_x = jax.random.split(key)

    params = init_params(k_params)

    # Small batch of synthetic pooled BERT outputs (B=16, hidden=768).
    B = 16
    cls_hs = jax.random.normal(k_x, (B, 768), jnp.float32)

    out = bert_regressor_head(cls_hs, params)
    out = jax.block_until_ready(out)

    ref = reference_head(cls_hs, params)
    assert out.shape == (B, 2)
    # bf16 matmul inputs (f32 accumulation) -> slightly looser tolerance.
    assert jnp.allclose(out, ref, atol=5e-2, rtol=5e-2)

    print("KERNEL_OK")
</pallas_src>

<mosaic_0001>
module attributes {stable_mosaic.version = 11 : i64} {
  func.func @_mlp_head_kernel(%arg0: i32, %arg1: memref<16x768xf32, #tpu.memory_space<vmem>>, %arg2: memref<768x128xbf16, #tpu.memory_space<vmem>>, %arg3: memref<1x128xf32, #tpu.memory_space<vmem>>, %arg4: memref<128x128xbf16, #tpu.memory_space<vmem>>, %arg5: memref<1x128xf32, #tpu.memory_space<vmem>>, %arg6: memref<128x2xbf16, #tpu.memory_space<vmem>>, %arg7: memref<1x2xf32, #tpu.memory_space<vmem>>, %arg8: memref<16x2xf32, #tpu.memory_space<vmem>>) attributes {dimension_semantics = [#tpu.dimension_semantics<parallel>], iteration_bounds = array<i64: 1>, scalar_prefetch = 0 : i64, scratch_operands = 0 : i64, tpu.core_type = #tpu.core_type<tc>, window_params = [{transform_indices = @transform_0, window_bounds = array<i64: 16, 768>}, {pipeline_mode = #tpu.pipeline_mode<synchronous>, transform_indices = @transform_1, window_bounds = array<i64: 768, 128>}, {pipeline_mode = #tpu.pipeline_mode<synchronous>, transform_indices = @transform_2, window_bounds = array<i64: 1, 128>}, {pipeline_mode = #tpu.pipeline_mode<synchronous>, transform_indices = @transform_3, window_bounds = array<i64: 128, 128>}, {pipeline_mode = #tpu.pipeline_mode<synchronous>, transform_indices = @transform_4, window_bounds = array<i64: 1, 128>}, {pipeline_mode = #tpu.pipeline_mode<synchronous>, transform_indices = @transform_5, window_bounds = array<i64: 128, 2>}, {pipeline_mode = #tpu.pipeline_mode<synchronous>, transform_indices = @transform_6, window_bounds = array<i64: 1, 2>}, {transform_indices = @transform_7, window_bounds = array<i64: 16, 2>}]} {
    %c0 = arith.constant 0 : index
    %c0_0 = arith.constant 0 : index
    %0 = vector.load %arg1[%c0, %c0_0] : memref<16x768xf32, #tpu.memory_space<vmem>>, vector<16x768xf32>
    %1 = arith.truncf %0 : vector<16x768xf32> to vector<16x768xbf16>
    %c0_1 = arith.constant 0 : index
    %c0_2 = arith.constant 0 : index
    %2 = vector.load %arg2[%c0_1, %c0_2] : memref<768x128xbf16, #tpu.memory_space<vmem>>, vector<768x128xbf16>
    %cst = arith.constant dense<0.000000e+00> : vector<16x128xf32>
    %3 = tpu.matmul %1, %2, %cst {dimension_numbers = #tpu.dot_dimension_numbers<[1], [0], [0], [1], [0, 0, 1, 1], [], []>} : vector<16x768xbf16>, vector<768x128xbf16>, vector<16x128xf32> -> vector<16x128xf32>
    %c0_3 = arith.constant 0 : index
    %c0_4 = arith.constant 0 : index
    %4 = vector.load %arg3[%c0_3, %c0_4] : memref<1x128xf32, #tpu.memory_space<vmem>>, vector<1x128xf32>
    %5 = vector.broadcast %4 : vector<1x128xf32> to vector<16x128xf32>
    %6 = arith.addf %3, %5 : vector<16x128xf32>
    %cst_5 = arith.constant 0.000000e+00 : f32
    %7 = vector.broadcast %cst_5 : f32 to vector<16x128xf32>
    %8 = arith.maximumf %6, %7 : vector<16x128xf32>
    %9 = arith.truncf %8 : vector<16x128xf32> to vector<16x128xbf16>
    %c0_6 = arith.constant 0 : index
    %c0_7 = arith.constant 0 : index
    %10 = vector.load %arg4[%c0_6, %c0_7] : memref<128x128xbf16, #tpu.memory_space<vmem>>, vector<128x128xbf16>
    %cst_8 = arith.constant dense<0.000000e+00> : vector<16x128xf32>
    %11 = tpu.matmul %9, %10, %cst_8 {dimension_numbers = #tpu.dot_dimension_numbers<[1], [0], [0], [1], [0, 0, 1, 1], [], []>} : vector<16x128xbf16>, vector<128x128xbf16>, vector<16x128xf32> -> vector<16x128xf32>
    %c0_9 = arith.constant 0 : index
    %c0_10 = arith.constant 0 : index
    %12 = vector.load %arg5[%c0_9, %c0_10] : memref<1x128xf32, #tpu.memory_space<vmem>>, vector<1x128xf32>
    %13 = vector.broadcast %12 : vector<1x128xf32> to vector<16x128xf32>
    %14 = arith.addf %11, %13 : vector<16x128xf32>
    %cst_11 = arith.constant 0.000000e+00 : f32
    %15 = vector.broadcast %cst_11 : f32 to vector<16x128xf32>
    %16 = arith.maximumf %14, %15 : vector<16x128xf32>
    %17 = arith.truncf %16 : vector<16x128xf32> to vector<16x128xbf16>
    %c0_12 = arith.constant 0 : index
    %c0_13 = arith.constant 0 : index
    %18 = vector.load %arg6[%c0_12, %c0_13] : memref<128x2xbf16, #tpu.memory_space<vmem>>, vector<128x2xbf16>
    %cst_14 = arith.constant dense<0.000000e+00> : vector<16x2xf32>
    %19 = tpu.matmul %17, %18, %cst_14 {dimension_numbers = #tpu.dot_dimension_numbers<[1], [0], [0], [1], [0, 0, 1, 1], [], []>} : vector<16x128xbf16>, vector<128x2xbf16>, vector<16x2xf32> -> vector<16x2xf32>
    %c0_15 = arith.constant 0 : index
    %c0_16 = arith.constant 0 : index
    %20 = vector.load %arg7[%c0_15, %c0_16] : memref<1x2xf32, #tpu.memory_space<vmem>>, vector<1x2xf32>
    %21 = vector.broadcast %20 : vector<1x2xf32> to vector<16x2xf32>
    %22 = arith.addf %19, %21 : vector<16x2xf32>
    %c0_17 = arith.constant 0 : index
    %c0_18 = arith.constant 0 : index
    %23 = vector.load %arg8[%c0_17, %c0_18] : memref<16x2xf32, #tpu.memory_space<vmem>>, vector<16x2xf32>
    tpu.vector_store %arg8[%c0_17, %c0_18], %22 {strides = array<i32>} : memref<16x2xf32, #tpu.memory_space<vmem>>, vector<16x2xf32>,
    return
  }
  func.func @transform_0(%arg0: i32) -> (i32, i32) {
    %c0_i32 = arith.constant 0 : i32
    %c0_i32_0 = arith.constant 0 : i32
    return %arg0, %c0_i32 : i32, i32
  }
  func.func @transform_1(%arg0: i32) -> (i32, i32) {
    %c0_i32 = arith.constant 0 : i32
    %c0_i32_0 = arith.constant 0 : i32
    %c0_i32_1 = arith.constant 0 : i32
    return %c0_i32, %c0_i32_0 : i32, i32
  }
  func.func @transform_2(%arg0: i32) -> (i32, i32) {
    %c0_i32 = arith.constant 0 : i32
    %c0_i32_0 = arith.constant 0 : i32
    %c0_i32_1 = arith.constant 0 : i32
    return %c0_i32, %c0_i32_0 : i32, i32
  }
  func.func @transform_3(%arg0: i32) -> (i32, i32) {
    %c0_i32 = arith.constant 0 : i32
    %c0_i32_0 = arith.constant 0 : i32
    %c0_i32_1 = arith.constant 0 : i32
    return %c0_i32, %c0_i32_0 : i32, i32
  }
  func.func @transform_4(%arg0: i32) -> (i32, i32) {
    %c0_i32 = arith.constant 0 : i32
    %c0_i32_0 = arith.constant 0 : i32
    %c0_i32_1 = arith.constant 0 : i32
    return %c0_i32, %c0_i32_0 : i32, i32
  }
  func.func @transform_5(%arg0: i32) -> (i32, i32) {
    %c0_i32 = arith.constant 0 : i32
    %c0_i32_0 = arith.constant 0 : i32
    %c0_i32_1 = arith.constant 0 : i32
    return %c0_i32, %c0_i32_0 : i32, i32
  }
  func.func @transform_6(%arg0: i32) -> (i32, i32) {
    %c0_i32 = arith.constant 0 : i32
    %c0_i32_0 = arith.constant 0 : i32
    %c0_i32_1 = arith.constant 0 : i32
    return %c0_i32, %c0_i32_0 : i32, i32
  }
  func.func @transform_7(%arg0: i32) -> (i32, i32) {
    %c0_i32 = arith.constant 0 : i32
    %c0_i32_0 = arith.constant 0 : i32
    return %arg0, %c0_i32 : i32, i32
  }
}

</mosaic_0001>

<llo_original>
// kernel: tpu_custom_call.1
$region0: #{tpu_custom_call.1}
  #allocation0 [shape = 'u32[]', space=smem, size = 0x4, offset = 0x4, fixed_abs, tag = 'smem constant byte address 0x4 - core index']
  #allocation1 [shape = 'u32[144,128]{1,0:T(1,128)}', space=vmem, size = 0x12000, scoped, tag = 'internal scratch']
  %s0 = inlined_call_operand.hbm [shape: f32[16,768], index: 0, kind: input, shape index: {}]
  %s1 = inlined_call_operand.hbm [shape: bf16[768,128], index: 1, kind: input, shape index: {}]
  %s2 = inlined_call_operand.vmem [shape: f32[1,128], index: 2, kind: input, shape index: {}]
  %s3 = inlined_call_operand.vmem [shape: bf16[128,128], index: 3, kind: input, shape index: {}]
  %s4 = inlined_call_operand.vmem [shape: f32[1,128], index: 4, kind: input, shape index: {}]
  %s5 = inlined_call_operand.vmem [shape: bf16[128,2], index: 5, kind: input, shape index: {}]
  %s6 = inlined_call_operand.vmem [shape: f32[1,2], index: 6, kind: input, shape index: {}]
  %s7 = inlined_call_operand.vmem [shape: f32[16,2], index: 7, kind: output, shape index: {}]
  %s8 = sld [smem:[#allocation0]]
  $region46: #{tpu_custom_call.1} parent=0
    _
  %s10 = ssub.s32 1, %s8
  %s11 = scalar_select 0, %s10, %s8
  $region1: #{tpu_custom_call.1} parent=0
    #allocation2 [shape = 'u8[49152]{0}', space=vmem, size = 0xc000, scoped, tag = 'input window, operand 0, single buffered']
    #allocation3 [shape = 's32[1]{0}', space=sflag, size = 0x4, scoped, tag = 'scoped memory for tpu_custom_call.1']
    #allocation4 [shape = 'u8[196608]{0}', space=vmem, size = 0x30000, scoped, tag = 'input window, operand 1, single buffered']
    #allocation5 [shape = 's32[1]{0}', space=sflag, size = 0x4, scoped, tag = 'scoped memory for tpu_custom_call.1']
    %12 = vsyncpa [#allocation3], 0
    %13 = vsyncpa [#allocation5], 0
    // Predicated region
    $region2: #{tpu_custom_call.1} parent=1 // pred_check
      _
    $region3: #{tpu_custom_call.1} parent=1 // pred_check_branch
      %15 = sbr.rel (0) target = $region5
    $region4: #{tpu_custom_call.1} parent=1 // pred_region
      %s17 = ssub.s32 1536, 1536
      %18 = vsyncadd [#allocation3], %s17
      %s19 = sshll.u32 [#allocation2], 4
      %s20 = int_to_ptr.vmem [resolvable:$true] %s19
      %25 = dma.hbm_to_vmem [thread:$0]  %s0, 1536, %s20, [#allocation3], 768, 768, 48
    $region5: #{tpu_custom_call.1} parent=1 // pred_fallthru
      _
    // Predicated region
    $region6: #{tpu_custom_call.1} parent=1 // pred_check
      _
    $region7: #{tpu_custom_call.1} parent=1 // pred_check_branch
      %27 = sbr.rel (0) target = $region9
    $region8: #{tpu_custom_call.1} parent=1 // pred_region
      %s29 = ssub.s32 6144, 6144
      %30 = vsyncadd [#allocation5], %s29
      %s31 = sshll.u32 [#allocation4], 4
      %s32 = int_to_ptr.vmem [resolvable:$true] %s31
      %37 = dma.hbm_to_vmem [thread:$0]  %s1, 6144, %s32, [#allocation5], 64, 64, 4
    $region9: #{tpu_custom_call.1} parent=1 // pred_fallthru
      _
    // Predicated region
    $region10: #{tpu_custom_call.1} parent=1 // pred_check
      _
    $region11: #{tpu_custom_call.1} parent=1 // pred_check_branch
      %39 = sbr.rel (0) target = $region13
    $region12: #{tpu_custom_call.1} parent=1 // pred_region
      _
    $region13: #{tpu_custom_call.1} parent=1 // pred_fallthru
      _
    // Predicated region
    $region14: #{tpu_custom_call.1} parent=1 // pred_check
      _
    $region15: #{tpu_custom_call.1} parent=1 // pred_check_branch
      %41 = sbr.rel (0) target = $region17
    $region16: #{tpu_custom_call.1} parent=1 // pred_region
      _
    $region17: #{tpu_custom_call.1} parent=1 // pred_fallthru
      _
    // Predicated region
    $region18: #{tpu_custom_call.1} parent=1 // pred_check
      _
    $region19: #{tpu_custom_call.1} parent=1 // pred_check_branch
      %43 = sbr.rel (0) target = $region21
    $region20: #{tpu_custom_call.1} parent=1 // pred_region
      _
    $region21: #{tpu_custom_call.1} parent=1 // pred_fallthru
      _
    // Predicated region
    $region22: #{tpu_custom_call.1} parent=1 // pred_check
      _
    $region23: #{tpu_custom_call.1} parent=1 // pred_check_branch
      %45 = sbr.rel (0) target = $region25
    $region24: #{tpu_custom_call.1} parent=1 // pred_region
      _
    $region25: #{tpu_custom_call.1} parent=1 // pred_fallthru
      _
    // Predicated region
    $region26: #{tpu_custom_call.1} parent=1 // pred_check
      _
    $region27: #{tpu_custom_call.1} parent=1 // pred_check_branch
      %47 = sbr.rel (0) target = $region29
    $region28: #{tpu_custom_call.1} parent=1 // pred_region
      _
    $region29: #{tpu_custom_call.1} parent=1 // pred_fallthru
      _
    // Predicated region
    $region30: #{tpu_custom_call.1} parent=1 // pred_check
      _
    $region31: #{tpu_custom_call.1} parent=1 // pred_check_branch
      %49 = sbr.rel (0) target = $region33
    $region32: #{tpu_custom_call.1} parent=1 // pred_region
      %50 = dma.done [#allocation3], 1536
    $region33: #{tpu_custom_call.1} parent=1 // pred_fallthru
      _
    // Predicated region
    $region34: #{tpu_custom_call.1} parent=1 // pred_check
      _
    $region35: #{tpu_custom_call.1} parent=1 // pred_check_branch
      %52 = sbr.rel (0) target = $region37
    $region36: #{tpu_custom_call.1} parent=1 // pred_region
      %53 = dma.done [#allocation5], 6144
    $region37: #{tpu_custom_call.1} parent=1 // pred_fallthru
      _
    %v55 = vld [vmem:[#allocation2] sm:$0xff]
    %v56 = vld [vmem:[#allocation2 + $0x8] sm:$0xff]
    %v57 = vld [vmem:[#allocation2 + $0x10] sm:$0xff]
    %v58 = vld [vmem:[#allocation2 + $0x18] sm:$0xff]
    %v59 = vld [vmem:[#allocation2 + $0x20] sm:$0xff]
    %v60 = vld [vmem:[#allocation2 + $0x28] sm:$0xff]
    %v61 = vld [vmem:[#allocation2 + $0x30] sm:$0xff]
    %v62 = vld [vmem:[#allocation2 + $0x38] sm:$0xff]
    %v63 = vld [vmem:[#allocation2 + $0x40] sm:$0xff]
    %v64 = vld [vmem:[#allocation2 + $0x48] sm:$0xff]
    %v65 = vld [vmem:[#allocation2 + $0x50] sm:$0xff]
    %v66 = vld [vmem:[#allocation2 + $0x58] sm:$0xff]
    %v67 = vpack.c.bf16 %v61, %v55
    %v68 = vpack.c.bf16 %v62, %v56
    %v69 = vpack.c.bf16 %v63, %v57
    %v70 = vpack.c.bf16 %v64, %v58
    %v71 = vpack.c.bf16 %v65, %v59
    %v72 = vpack.c.bf16 %v66, %v60
    %v73 = vld [vmem:[#allocation4] sm:$0xf]
    %v74 = vld [vmem:[#allocation4 + $0x4] sm:$0xf]
    %v75 = vld [vmem:[#allocation4 + $0x8] sm:$0xf]
    %v76 = vld [vmem:[#allocation4 + $0xc] sm:$0xf]
    %v77 = vld [vmem:[#allocation4 + $0x10] sm:$0xf]
    %v78 = vld [vmem:[#allocation4 + $0x14] sm:$0xf]
    %v79 = vld [vmem:[#allocation4 + $0x18] sm:$0xf]
    %v80 = vld [vmem:[#allocation4 + $0x1c] sm:$0xf]
    %v81 = vld [vmem:[#allocation4 + $0x20] sm:$0xf]
    %v82 = vld [vmem:[#allocation4 + $0x24] sm:$0xf]
    %v83 = vld [vmem:[#allocation4 + $0x28] sm:$0xf]
    %v84 = vld [vmem:[#allocation4 + $0x2c] sm:$0xf]
    %v85 = vld [vmem:[#allocation4 + $0x30] sm:$0xf]
    %v86 = vld [vmem:[#allocation4 + $0x34] sm:$0xf]
    %v87 = vld [vmem:[#allocation4 + $0x38] sm:$0xf]
    %v88 = vld [vmem:[#allocation4 + $0x3c] sm:$0xf]
    %v89 = vld [vmem:[#allocation4 + $0x40] sm:$0xf]
    %v90 = vld [vmem:[#allocation4 + $0x44] sm:$0xf]
    %v91 = vld [vmem:[#allocation4 + $0x48] sm:$0xf]
    %v92 = vld [vmem:[#allocation4 + $0x4c] sm:$0xf]
    %v93 = vld [vmem:[#allocation4 + $0x50] sm:$0xf]
    %v94 = vld [vmem:[#allocation4 + $0x54] sm:$0xf]
    %v95 = vld [vmem:[#allocation4 + $0x58] sm:$0xf]
    %v96 = vld [vmem:[#allocation4 + $0x5c] sm:$0xf]
    %v97 = vld [vmem:[#allocation4 + $0x60] sm:$0xf]
    %v98 = vld [vmem:[#allocation4 + $0x64] sm:$0xf]
    %v99 = vld [vmem:[#allocation4 + $0x68] sm:$0xf]
    %v100 = vld [vmem:[#allocation4 + $0x6c] sm:$0xf]
    %v101 = vld [vmem:[#allocation4 + $0x70] sm:$0xf]
    %v102 = vld [vmem:[#allocation4 + $0x74] sm:$0xf]
    %v103 = vld [vmem:[#allocation4 + $0x78] sm:$0xf]
    %v104 = vld [vmem:[#allocation4 + $0x7c] sm:$0xf]
    %v105 = vld [vmem:[#allocation4 + $0x80] sm:$0xf]
    %v106 = vld [vmem:[#allocation4 + $0x84] sm:$0xf]
    %v107 = vld [vmem:[#allocation4 + $0x88] sm:$0xf]
    %v108 = vld [vmem:[#allocation4 + $0x8c] sm:$0xf]
    %v109 = vld [vmem:[#allocation4 + $0x90] sm:$0xf]
    %v110 = vld [vmem:[#allocation4 + $0x94] sm:$0xf]
    %v111 = vld [vmem:[#allocation4 + $0x98] sm:$0xf]
    %v112 = vld [vmem:[#allocation4 + $0x9c] sm:$0xf]
    %v113 = vld [vmem:[#allocation4 + $0xa0] sm:$0xf]
    %v114 = vld [vmem:[#allocation4 + $0xa4] sm:$0xf]
    %v115 = vld [vmem:[#allocation4 + $0xa8] sm:$0xf]
    %v116 = vld [vmem:[#allocation4 + $0xac] sm:$0xf]
    %v117 = vld [vmem:[#allocation4 + $0xb0] sm:$0xf]
    %v118 = vld [vmem:[#allocation4 + $0xb4] sm:$0xf]
    %v119 = vld [vmem:[#allocation4 + $0xb8] sm:$0xf]
    %v120 = vld [vmem:[#allocation4 + $0xbc] sm:$0xf]
    %v121 = vld [vmem:[#allocation4 + $0xc0] sm:$0xf]
    %v122 = vld [vmem:[#allocation4 + $0xc4] sm:$0xf]
    %v123 = vld [vmem:[#allocation4 + $0xc8] sm:$0xf]
    %v124 = vld [vmem:[#allocation4 + $0xcc] sm:$0xf]
    %v125 = vld [vmem:[#allocation4 + $0xd0] sm:$0xf]
    %v126 = vld [vmem:[#allocation4 + $0xd4] sm:$0xf]
    %v127 = vld [vmem:[#allocation4 + $0xd8] sm:$0xf]
    %v128 = vld [vmem:[#allocation4 + $0xdc] sm:$0xf]
    %v129 = vld [vmem:[#allocation4 + $0xe0] sm:$0xf]
    %v130 = vld [vmem:[#allocation4 + $0xe4] sm:$0xf]
    %v131 = vld [vmem:[#allocation4 + $0xe8] sm:$0xf]
    %v132 = vld [vmem:[#allocation4 + $0xec] sm:$0xf]
    %v133 = vld [vmem:[#allocation4 + $0xf0] sm:$0xf]
    %v134 = vld [vmem:[#allocation4 + $0xf4] sm:$0xf]
    %v135 = vld [vmem:[#allocation4 + $0xf8] sm:$0xf]
    %v136 = vld [vmem:[#allocation4 + $0xfc] sm:$0xf]
    %v137 = vld [vmem:[#allocation4 + $0x100] sm:$0xf]
    %v138 = vld [vmem:[#allocation4 + $0x104] sm:$0xf]
    %v139 = vld [vmem:[#allocation4 + $0x108] sm:$0xf]
    %v140 = vld [vmem:[#allocation4 + $0x10c] sm:$0xf]
    %v141 = vld [vmem:[#allocation4 + $0x110] sm:$0xf]
    %v142 = vld [vmem:[#allocation4 + $0x114] sm:$0xf]
    %v143 = vld [vmem:[#allocation4 + $0x118] sm:$0xf]
    %v144 = vld [vmem:[#allocation4 + $0x11c] sm:$0xf]
    %v145 = vld [vmem:[#allocation4 + $0x120] sm:$0xf]
    %v146 = vld [vmem:[#allocation4 + $0x124] sm:$0xf]
    %v147 = vld [vmem:[#allocation4 + $0x128] sm:$0xf]
    %v148 = vld [vmem:[#allocation4 + $0x12c] sm:$0xf]
    %v149 = vld [vmem:[#allocation4 + $0x130] sm:$0xf]
    %v150 = vld [vmem:[#allocation4 + $0x134] sm:$0xf]
    %v151 = vld [vmem:[#allocation4 + $0x138] sm:$0xf]
    %v152 = vld [vmem:[#allocation4 + $0x13c] sm:$0xf]
    %v153 = vld [vmem:[#allocation4 + $0x140] sm:$0xf]
    %v154 = vld [vmem:[#allocation4 + $0x144] sm:$0xf]
    %v155 = vld [vmem:[#allocation4 + $0x148] sm:$0xf]
    %v156 = vld [vmem:[#allocation4 + $0x14c] sm:$0xf]
    %v157 = vld [vmem:[#allocation4 + $0x150] sm:$0xf]
    %v158 = vld [vmem:[#allocation4 + $0x154] sm:$0xf]
    %v159 = vld [vmem:[#allocation4 + $0x158] sm:$0xf]
    %v160 = vld [vmem:[#allocation4 + $0x15c] sm:$0xf]
    %v161 = vld [vmem:[#allocation4 + $0x160] sm:$0xf]
    %v162 = vld [vmem:[#allocation4 + $0x164] sm:$0xf]
    %v163 = vld [vmem:[#allocation4 + $0x168] sm:$0xf]
    %v164 = vld [vmem:[#allocation4 + $0x16c] sm:$0xf]
    %v165 = vld [vmem:[#allocation4 + $0x170] sm:$0xf]
    %v166 = vld [vmem:[#allocation4 + $0x174] sm:$0xf]
    %v167 = vld [vmem:[#allocation4 + $0x178] sm:$0xf]
    %v168 = vld [vmem:[#allocation4 + $0x17c] sm:$0xf]
    %v169 = vld [vmem:[%s2] sm:$0x1]
    %v171 = vlaneseq
    %v172 = vshrl.u32 %v171, 7
    %v173 = vsub.s32 0, %v172
    %v174 = vrot.slane %v169, %v173
    %v272 = vunpack.c.l.b16 %v73
    %v273 = vunpack.c.l.b16 %v74
    %v274 = vunpack.c.l.b16 %v75
    %v275 = vunpack.c.l.b16 %v76
    %v276 = vunpack.c.l.b16 %v77
    %v277 = vunpack.c.l.b16 %v78
    %v278 = vunpack.c.l.b16 %v79
    %v279 = vunpack.c.l.b16 %v80
    %v280 = vunpack.c.l.b16 %v81
    %v281 = vunpack.c.l.b16 %v82
    %v282 = vunpack.c.l.b16 %v83
    %v283 = vunpack.c.l.b16 %v84
    %v284 = vunpack.c.l.b16 %v85
    %v285 = vunpack.c.l.b16 %v86
    %v286 = vunpack.c.l.b16 %v87
    %v287 = vunpack.c.l.b16 %v88
    %v288 = vunpack.c.l.b16 %v89
    %v289 = vunpack.c.l.b16 %v90
    %v290 = vunpack.c.l.b16 %v91
    %v291 = vunpack.c.l.b16 %v92
    %v292 = vunpack.c.l.b16 %v93
    %v293 = vunpack.c.l.b16 %v94
    %v294 = vunpack.c.l.b16 %v95
    %v295 = vunpack.c.l.b16 %v96
    %v296 = vunpack.c.l.b16 %v97
    %v297 = vunpack.c.l.b16 %v98
    %v298 = vunpack.c.l.b16 %v99
    %v299 = vunpack.c.l.b16 %v100
    %v300 = vunpack.c.l.b16 %v101
    %v301 = vunpack.c.l.b16 %v102
    %v302 = vunpack.c.l.b16 %v103
    %v303 = vunpack.c.l.b16 %v104
    %v304 = vunpack.c.l.b16 %v105
    %v305 = vunpack.c.l.b16 %v106
    %v306 = vunpack.c.l.b16 %v107
    %v307 = vunpack.c.l.b16 %v108
    %v308 = vunpack.c.l.b16 %v109
    %v309 = vunpack.c.l.b16 %v110
    %v310 = vunpack.c.l.b16 %v111
    %v311 = vunpack.c.l.b16 %v112
    %v312 = vunpack.c.l.b16 %v113
    %v313 = vunpack.c.l.b16 %v114
    %v314 = vunpack.c.l.b16 %v115
    %v315 = vunpack.c.l.b16 %v116
    %v316 = vunpack.c.l.b16 %v117
    %v317 = vunpack.c.l.b16 %v118
    %v318 = vunpack.c.l.b16 %v119
    %v319 = vunpack.c.l.b16 %v120
    %v320 = vunpack.c.l.b16 %v121
    %v321 = vunpack.c.l.b16 %v122
    %v322 = vunpack.c.l.b16 %v123
    %v323 = vunpack.c.l.b16 %v124
    %v324 = vunpack.c.l.b16 %v125
    %v325 = vunpack.c.l.b16 %v126
    %v326 = vunpack.c.l.b16 %v127
    %v327 = vunpack.c.l.b16 %v128
    %v328 = vunpack.c.l.b16 %v129
    %v329 = vunpack.c.l.b16 %v130
    %v330 = vunpack.c.l.b16 %v131
    %v331 = vunpack.c.l.b16 %v132
    %v332 = vunpack.c.l.b16 %v133
    %v333 = vunpack.c.l.b16 %v134
    %v334 = vunpack.c.l.b16 %v135
    %v335 = vunpack.c.l.b16 %v136
    %v336 = vunpack.c.l.b16 %v137
    %v337 = vunpack.c.l.b16 %v138
    %v338 = vunpack.c.l.b16 %v139
    %v339 = vunpack.c.l.b16 %v140
    %v340 = vunpack.c.l.b16 %v141
    %v341 = vunpack.c.l.b16 %v142
    %v342 = vunpack.c.l.b16 %v143
    %v343 = vunpack.c.l.b16 %v144
    %v344 = vunpack.c.l.b16 %v145
    %v345 = vunpack.c.l.b16 %v146
    %v346 = vunpack.c.l.b16 %v147
    %v347 = vunpack.c.l.b16 %v148
    %v348 = vunpack.c.l.b16 %v149
    %v349 = vunpack.c.l.b16 %v150
    %v350 = vunpack.c.l.b16 %v151
    %v351 = vunpack.c.l.b16 %v152
    %v352 = vunpack.c.l.b16 %v153
    %v353 = vunpack.c.l.b16 %v154
    %v354 = vunpack.c.l.b16 %v155
    %v355 = vunpack.c.l.b16 %v156
    %v356 = vunpack.c.l.b16 %v157
    %v357 = vunpack.c.l.b16 %v158
    %v358 = vunpack.c.l.b16 %v159
    %v359 = vunpack.c.l.b16 %v160
    %v360 = vunpack.c.l.b16 %v161
    %v361 = vunpack.c.l.b16 %v162
    %v362 = vunpack.c.l.b16 %v163
    %v363 = vunpack.c.l.b16 %v164
    %v364 = vunpack.c.l.b16 %v165
    %v365 = vunpack.c.l.b16 %v166
    %v366 = vunpack.c.l.b16 %v167
    %v367 = vunpack.c.l.b16 %v168
    %v368 = vpack.c.b16 %v273, %v272
    %v369 = vpack.c.b16 %v275, %v274
    %v370 = vpack.c.b16 %v277, %v276
    %v371 = vpack.c.b16 %v279, %v278
    %v372 = vpack.c.b16 %v281, %v280
    %v373 = vpack.c.b16 %v283, %v282
    %v374 = vpack.c.b16 %v285, %v284
    %v375 = vpack.c.b16 %v287, %v286
    %v376 = vpack.c.b16 %v289, %v288
    %v377 = vpack.c.b16 %v291, %v290
    %v378 = vpack.c.b16 %v293, %v292
    %v379 = vpack.c.b16 %v295, %v294
    %v380 = vpack.c.b16 %v297, %v296
    %v381 = vpack.c.b16 %v299, %v298
    %v382 = vpack.c.b16 %v301, %v300
    %v383 = vpack.c.b16 %v303, %v302
    %v384 = vpack.c.b16 %v305, %v304
    %v385 = vpack.c.b16 %v307, %v306
    %v386 = vpack.c.b16 %v309, %v308
    %v387 = vpack.c.b16 %v311, %v310
    %v388 = vpack.c.b16 %v313, %v312
    %v389 = vpack.c.b16 %v315, %v314
    %v390 = vpack.c.b16 %v317, %v316
    %v391 = vpack.c.b16 %v319, %v318
    %v392 = vpack.c.b16 %v321, %v320
    %v393 = vpack.c.b16 %v323, %v322
    %v394 = vpack.c.b16 %v325, %v324
    %v395 = vpack.c.b16 %v327, %v326
    %v396 = vpack.c.b16 %v329, %v328
    %v397 = vpack.c.b16 %v331, %v330
    %v398 = vpack.c.b16 %v333, %v332
    %v399 = vpack.c.b16 %v335, %v334
    %v400 = vpack.c.b16 %v337, %v336
    %v401 = vpack.c.b16 %v339, %v338
    %v402 = vpack.c.b16 %v341, %v340
    %v403 = vpack.c.b16 %v343, %v342
    %v404 = vpack.c.b16 %v345, %v344
    %v405 = vpack.c.b16 %v347, %v346
    %v406 = vpack.c.b16 %v349, %v348
    %v407 = vpack.c.b16 %v351, %v350
    %v408 = vpack.c.b16 %v353, %v352
    %v409 = vpack.c.b16 %v355, %v354
    %v410 = vpack.c.b16 %v357, %v356
    %v411 = vpack.c.b16 %v359, %v358
    %v412 = vpack.c.b16 %v361, %v360
    %v413 = vpack.c.b16 %v363, %v362
    %v414 = vpack.c.b16 %v365, %v364
    %v415 = vpack.c.b16 %v367, %v366
    %464 = vmatprep.subr.bf16.mxu0 0
    %465 = vmatpush1.bf16.msra.mxu0 %v375
    %466 = vmatprep.subr.bf16.mxu0 0
    %467 = vmatpush1.bf16.msra.mxu0 %v374
    %468 = vmatprep.subr.bf16.mxu0 0
    %469 = vmatpush1.bf16.msra.mxu0 %v373
    %470 = vmatprep.subr.bf16.mxu0 0
    %471 = vmatpush1.bf16.msra.mxu0 %v372
    %472 = vmatprep.subr.bf16.mxu0 0
    %473 = vmatpush1.bf16.msra.mxu0 %v371
    %474 = vmatprep.subr.bf16.mxu0 0
    %475 = vmatpush1.bf16.msra.mxu0 %v370
    %476 = vmatprep.subr.bf16.mxu0 0
    %477 = vmatpush1.bf16.msra.mxu0 %v369
    %478 = vmatprep.subr.bf16.mxu0 0
    %479 = vmatpush1.bf16.msra.mxu0 %v368
    %480 = vmatprep.subr.bf16.mxu0 0
    %481 = vmatpush2.bf16.msra.mxu0 %v383
    %482 = vmatprep.subr.bf16.mxu0 0
    %483 = vmatpush2.bf16.msra.mxu0 %v382
    %484 = vmatprep.subr.bf16.mxu0 0
    %485 = vmatpush2.bf16.msra.mxu0 %v381
    %486 = vmatprep.subr.bf16.mxu0 0
    %487 = vmatpush2.bf16.msra.mxu0 %v380
    %488 = vmatprep.subr.bf16.mxu0 0
    %489 = vmatpush2.bf16.msra.mxu0 %v379
    %490 = vmatprep.subr.bf16.mxu0 0
    %491 = vmatpush2.bf16.msra.mxu0 %v378
    %492 = vmatprep.subr.bf16.mxu0 0
    %493 = vmatpush2.bf16.msra.mxu0 %v377
    %494 = vmatprep.subr.bf16.mxu0 0
    %495 = vmatpush2.bf16.msra.mxu0 %v376
    %496 = vmatprep.mubr.bf16.mxu0 %v68
    %497 = vmatmul.mubr.bf16.gmra.mxu0 %v67
    %v498 = vpop.f32.mrf.mxu0
    %v499 = vadd.f32 %v174, %v498
    %v500 = vpop.f32.mrf.mxu0
    %v501 = vpop.f32.mrf.mxu0
    %v502 = vadd.f32 %v174, %v501
    %v503 = vpop.f32.mrf.mxu0
    %504 = vdwg.mxu0
    %505 = vmatprep.subr.bf16.mxu0 0
    %506 = vmatpush1.bf16.msra.mxu0 %v391
    %507 = vmatprep.subr.bf16.mxu0 0
    %508 = vmatpush1.bf16.msra.mxu0 %v390
    %509 = vmatprep.subr.bf16.mxu0 0
    %510 = vmatpush1.bf16.msra.mxu0 %v389
    %511 = vmatprep.subr.bf16.mxu0 0
    %512 = vmatpush1.bf16.msra.mxu0 %v388
    %513 = vmatprep.subr.bf16.mxu0 0
    %514 = vmatpush1.bf16.msra.mxu0 %v387
    %515 = vmatprep.subr.bf16.mxu0 0
    %516 = vmatpush1.bf16.msra.mxu0 %v386
    %517 = vmatprep.subr.bf16.mxu0 0
    %518 = vmatpush1.bf16.msra.mxu0 %v385
    %519 = vmatprep.subr.bf16.mxu0 0
    %520 = vmatpush1.bf16.msra.mxu0 %v384
    %521 = vmatprep.subr.bf16.mxu0 0
    %522 = vmatpush2.bf16.msra.mxu0 %v399
    %523 = vmatprep.subr.bf16.mxu0 0
    %524 = vmatpush2.bf16.msra.mxu0 %v398
    %525 = vmatprep.subr.bf16.mxu0 0
    %526 = vmatpush2.bf16.msra.mxu0 %v397
    %527 = vmatprep.subr.bf16.mxu0 0
    %528 = vmatpush2.bf16.msra.mxu0 %v396
    %529 = vmatprep.subr.bf16.mxu0 0
    %530 = vmatpush2.bf16.msra.mxu0 %v395
    %531 = vmatprep.subr.bf16.mxu0 0
    %532 = vmatpush2.bf16.msra.mxu0 %v394
    %533 = vmatprep.subr.bf16.mxu0 0
    %534 = vmatpush2.bf16.msra.mxu0 %v393
    %535 = vmatprep.subr.bf16.mxu0 0
    %536 = vmatpush2.bf16.msra.mxu0 %v392
    %537 = vmatprep.mubr.bf16.mxu0 %v70
    %538 = vmatmul.mubr.bf16.gmra.mxu0 %v69
    %v539 = vpop.f32.mrf.mxu0
    %v540 = vadd.f32 %v499, %v539
    %v541 = vpop.f32.mrf.mxu0
    %v542 = vpop.f32.mrf.mxu0
    %v543 = vadd.f32 %v502, %v542
    %v544 = vpop.f32.mrf.mxu0
    %545 = vdwg.mxu0
    %546 = vmatprep.subr.bf16.mxu0 0
    %547 = vmatpush1.bf16.msra.mxu0 %v407
    %548 = vmatprep.subr.bf16.mxu0 0
    %549 = vmatpush1.bf16.msra.mxu0 %v406
    %550 = vmatprep.subr.bf16.mxu0 0
    %551 = vmatpush1.bf16.msra.mxu0 %v405
    %552 = vmatprep.subr.bf16.mxu0 0
    %553 = vmatpush1.bf16.msra.mxu0 %v404
    %554 = vmatprep.subr.bf16.mxu0 0
    %555 = vmatpush1.bf16.msra.mxu0 %v403
    %556 = vmatprep.subr.bf16.mxu0 0
    %557 = vmatpush1.bf16.msra.mxu0 %v402
    %558 = vmatprep.subr.bf16.mxu0 0
    %559 = vmatpush1.bf16.msra.mxu0 %v401
    %560 = vmatprep.subr.bf16.mxu0 0
    %561 = vmatpush1.bf16.msra.mxu0 %v400
    %562 = vmatprep.subr.bf16.mxu0 0
    %563 = vmatpush2.bf16.msra.mxu0 %v415
    %564 = vmatprep.subr.bf16.mxu0 0
    %565 = vmatpush2.bf16.msra.mxu0 %v414
    %566 = vmatprep.subr.bf16.mxu0 0
    %567 = vmatpush2.bf16.msra.mxu0 %v413
    %568 = vmatprep.subr.bf16.mxu0 0
    %569 = vmatpush2.bf16.msra.mxu0 %v412
    %570 = vmatprep.subr.bf16.mxu0 0
    %571 = vmatpush2.bf16.msra.mxu0 %v411
    %572 = vmatprep.subr.bf16.mxu0 0
    %573 = vmatpush2.bf16.msra.mxu0 %v410
    %574 = vmatprep.subr.bf16.mxu0 0
    %575 = vmatpush2.bf16.msra.mxu0 %v409
    %576 = vmatprep.subr.bf16.mxu0 0
    %577 = vmatpush2.bf16.msra.mxu0 %v408
    %578 = vmatprep.mubr.bf16.mxu0 %v72
    %579 = vmatmul.mubr.bf16.gmra.mxu0 %v71
    %v580 = vpop.f32.mrf.mxu0
    %v581 = vadd.f32 %v540, %v580
    %v582 = vpop.f32.mrf.mxu0
    %v583 = vpop.f32.mrf.mxu0
    %v584 = vadd.f32 %v543, %v583
    %v585 = vpop.f32.mrf.mxu0
    %586 = vdwg.mxu0
    %v587 = vmax.f32 %v581, 0.0
    %v588 = vmax.f32 %v584, 0.0
    %v589 = vpack.c.bf16 %v588, %v587
    %v590 = vld [vmem:[%s3] sm:$0xf]
    %v591 = vld [vmem:[%s3 + $0x4] sm:$0xf]
    %v592 = vld [vmem:[%s3 + $0x8] sm:$0xf]
    %v593 = vld [vmem:[%s3 + $0xc] sm:$0xf]
    %v594 = vld [vmem:[%s3 + $0x10] sm:$0xf]
    %v595 = vld [vmem:[%s3 + $0x14] sm:$0xf]
    %v596 = vld [vmem:[%s3 + $0x18] sm:$0xf]
    %v597 = vld [vmem:[%s3 + $0x1c] sm:$0xf]
    %v598 = vld [vmem:[%s3 + $0x20] sm:$0xf]
    %v599 = vld [vmem:[%s3 + $0x24] sm:$0xf]
    %v600 = vld [vmem:[%s3 + $0x28] sm:$0xf]
    %v601 = vld [vmem:[%s3 + $0x2c] sm:$0xf]
    %v602 = vld [vmem:[%s3 + $0x30] sm:$0xf]
    %v603 = vld [vmem:[%s3 + $0x34] sm:$0xf]
    %v604 = vld [vmem:[%s3 + $0x38] sm:$0xf]
    %v605 = vld [vmem:[%s3 + $0x3c] sm:$0xf]
    %v606 = vld [vmem:[%s4] sm:$0x1]
    %v608 = vlaneseq
    %v609 = vshrl.u32 %v608, 7
    %v610 = vsub.s32 0, %v609
    %v611 = vrot.slane %v606, %v610
    %v629 = vunpack.c.l.b16 %v590
    %v630 = vunpack.c.l.b16 %v591
    %v631 = vunpack.c.l.b16 %v592
    %v632 = vunpack.c.l.b16 %v593
    %v633 = vunpack.c.l.b16 %v594
    %v634 = vunpack.c.l.b16 %v595
    %v635 = vunpack.c.l.b16 %v596
    %v636 = vunpack.c.l.b16 %v597
    %v637 = vunpack.c.l.b16 %v598
    %v638 = vunpack.c.l.b16 %v599
    %v639 = vunpack.c.l.b16 %v600
    %v640 = vunpack.c.l.b16 %v601
    %v641 = vunpack.c.l.b16 %v602
    %v642 = vunpack.c.l.b16 %v603
    %v643 = vunpack.c.l.b16 %v604
    %v644 = vunpack.c.l.b16 %v605
    %v645 = vpack.c.b16 %v630, %v629
    %v646 = vpack.c.b16 %v632, %v631
    %v647 = vpack.c.b16 %v634, %v633
    %v648 = vpack.c.b16 %v636, %v635
    %v649 = vpack.c.b16 %v638, %v637
    %v650 = vpack.c.b16 %v640, %v639
    %v651 = vpack.c.b16 %v642, %v641
    %v652 = vpack.c.b16 %v644, %v643
    %661 = vmatprep.subr.bf16.mxu0 0
    %662 = vmatpush1.bf16.msra.mxu0 %v652
    %663 = vmatprep.subr.bf16.mxu0 0
    %664 = vmatpush1.bf16.msra.mxu0 %v651
    %665 = vmatprep.subr.bf16.mxu0 0
    %666 = vmatpush1.bf16.msra.mxu0 %v650
    %667 = vmatprep.subr.bf16.mxu0 0
    %668 = vmatpush1.bf16.msra.mxu0 %v649
    %669 = vmatprep.subr.bf16.mxu0 0
    %670 = vmatpush1.bf16.msra.mxu0 %v648
    %671 = vmatprep.subr.bf16.mxu0 0
    %672 = vmatpush1.bf16.msra.mxu0 %v647
    %673 = vmatprep.subr.bf16.mxu0 0
    %674 = vmatpush1.bf16.msra.mxu0 %v646
    %675 = vmatprep.subr.bf16.mxu0 0
    %676 = vmatpush1.bf16.msra.mxu0 %v645
    %677 = vmatprep.subr.bf16.mxu0 0
    %678 = vmatpush2.bf16.msra.mxu0 0
    %679 = vmatprep.subr.bf16.mxu0 0
    %680 = vmatpush2.bf16.msra.mxu0 0
    %681 = vmatprep.subr.bf16.mxu0 0
    %682 = vmatpush2.bf16.msra.mxu0 0
    %683 = vmatprep.subr.bf16.mxu0 0
    %684 = vmatpush2.bf16.msra.mxu0 0
    %685 = vmatprep.subr.bf16.mxu0 0
    %686 = vmatpush2.bf16.msra.mxu0 0
    %687 = vmatprep.subr.bf16.mxu0 0
    %688 = vmatpush2.bf16.msra.mxu0 0
    %689 = vmatprep.subr.bf16.mxu0 0
    %690 = vmatpush2.bf16.msra.mxu0 0
    %691 = vmatprep.subr.bf16.mxu0 0
    %692 = vmatpush2.bf16.msra.mxu0 0
    %693 = vmatprep.mubr.bf16.mxu0 0
    %694 = vmatmul.mubr.bf16.gmra.mxu0 %v589
    %v695 = vpop.f32.mrf.mxu0
    %v696 = vadd.f32 %v611, %v695
    %v697 = vpop.f32.mrf.mxu0
    %v698 = vpop.f32.mrf.mxu0
    %v699 = vadd.f32 %v611, %v698
    %v700 = vpop.f32.mrf.mxu0
    %701 = vdwg.mxu0
    %v702 = vmax.f32 %v696, 0.0
    %v703 = vmax.f32 %v699, 0.0
    %v704 = vpack.c.bf16 %v703, %v702
    %v705 = vld [vmem:[%s5] sm:$0xf]
    %v706 = vld [vmem:[%s5 + $0x4] sm:$0xf]
    %v707 = vld [vmem:[%s5 + $0x8] sm:$0xf]
    %v708 = vld [vmem:[%s5 + $0xc] sm:$0xf]
    %v709 = vld [vmem:[%s5 + $0x10] sm:$0xf]
    %v710 = vld [vmem:[%s5 + $0x14] sm:$0xf]
    %v711 = vld [vmem:[%s5 + $0x18] sm:$0xf]
    %v712 = vld [vmem:[%s5 + $0x1c] sm:$0xf]
    %v713 = vld [vmem:[%s5 + $0x20] sm:$0xf]
    %v714 = vld [vmem:[%s5 + $0x24] sm:$0xf]
    %v715 = vld [vmem:[%s5 + $0x28] sm:$0xf]
    %v716 = vld [vmem:[%s5 + $0x2c] sm:$0xf]
    %v717 = vld [vmem:[%s5 + $0x30] sm:$0xf]
    %v718 = vld [vmem:[%s5 + $0x34] sm:$0xf]
    %v719 = vld [vmem:[%s5 + $0x38] sm:$0xf]
    %v720 = vld [vmem:[%s5 + $0x3c] sm:$0xf]
    %v721 = vld [vmem:[%s6] sm:$0x1]
    %v723 = vlaneseq
    %v724 = vshrl.u32 %v723, 7
    %v725 = vsub.s32 0, %v724
    %v726 = vrot.slane %v721, %v725
    %v744 = vunpack.c.l.b16 %v705
    %v745 = vunpack.c.l.b16 %v706
    %v746 = vunpack.c.l.b16 %v707
    %v747 = vunpack.c.l.b16 %v708
    %v748 = vunpack.c.l.b16 %v709
    %v749 = vunpack.c.l.b16 %v710
    %v750 = vunpack.c.l.b16 %v711
    %v751 = vunpack.c.l.b16 %v712
    %v752 = vunpack.c.l.b16 %v713
    %v753 = vunpack.c.l.b16 %v714
    %v754 = vunpack.c.l.b16 %v715
    %v755 = vunpack.c.l.b16 %v716
    %v756 = vunpack.c.l.b16 %v717
    %v757 = vunpack.c.l.b16 %v718
    %v758 = vunpack.c.l.b16 %v719
    %v759 = vunpack.c.l.b16 %v720
    %v760 = vpack.c.b16 %v745, %v744
    %v761 = vpack.c.b16 %v747, %v746
    %v762 = vpack.c.b16 %v749, %v748
    %v763 = vpack.c.b16 %v751, %v750
    %v764 = vpack.c.b16 %v753, %v752
    %v765 = vpack.c.b16 %v755, %v754
    %v766 = vpack.c.b16 %v757, %v756
    %v767 = vpack.c.b16 %v759, %v758
    %776 = vmatprep.subr.bf16.mxu0 0
    %777 = vmatpush1.bf16.msra.mxu0 %v767
    %778 = vmatprep.subr.bf16.mxu0 0
    %779 = vmatpush1.bf16.msra.mxu0 %v766
    %780 = vmatprep.subr.bf16.mxu0 0
    %781 = vmatpush1.bf16.msra.mxu0 %v765
    %782 = vmatprep.subr.bf16.mxu0 0
    %783 = vmatpush1.bf16.msra.mxu0 %v764
    %784 = vmatprep.subr.bf16.mxu0 0
    %785 = vmatpush1.bf16.msra.mxu0 %v763
    %786 = vmatprep.subr.bf16.mxu0 0
    %787 = vmatpush1.bf16.msra.mxu0 %v762
    %788 = vmatprep.subr.bf16.mxu0 0
    %789 = vmatpush1.bf16.msra.mxu0 %v761
    %790 = vmatprep.subr.bf16.mxu0 0
    %791 = vmatpush1.bf16.msra.mxu0 %v760
    %792 = vmatprep.subr.bf16.mxu0 0
    %793 = vmatpush2.bf16.msra.mxu0 0
    %794 = vmatprep.subr.bf16.mxu0 0
    %795 = vmatpush2.bf16.msra.mxu0 0
    %796 = vmatprep.subr.bf16.mxu0 0
    %797 = vmatpush2.bf16.msra.mxu0 0
    %798 = vmatprep.subr.bf16.mxu0 0
    %799 = vmatpush2.bf16.msra.mxu0 0
    %800 = vmatprep.subr.bf16.mxu0 0
    %801 = vmatpush2.bf16.msra.mxu0 0
    %802 = vmatprep.subr.bf16.mxu0 0
    %803 = vmatpush2.bf16.msra.mxu0 0
    %804 = vmatprep.subr.bf16.mxu0 0
    %805 = vmatpush2.bf16.msra.mxu0 0
    %806 = vmatprep.subr.bf16.mxu0 0
    %807 = vmatpush2.bf16.msra.mxu0 0
    %808 = vmatprep.mubr.bf16.mxu0 0
    %809 = vmatmul.mubr.bf16.gmra.mxu0 %v704
    %v810 = vpop.f32.mrf.mxu0
    %v811 = vadd.f32 %v726, %v810
    %v812 = vpop.f32.mrf.mxu0
    %v813 = vpop.f32.mrf.mxu0
    %v814 = vadd.f32 %v726, %v813
    %v815 = vpop.f32.mrf.mxu0
    %816 = vdwg.mxu0
    %vm817 = vcmask 15360
    %818 = vst.msk [vmem:[%s7] sm:$0xff] %vm817, %v811
    %819 = vst.msk [vmem:[%s7 + $0x8] sm:$0xff] %vm817, %v814
    // Predicated region
    $region38: #{tpu_custom_call.1} parent=1 // pred_check
      _
    $region39: #{tpu_custom_call.1} parent=1 // pred_check_branch
      %821 = sbr.rel (0) target = $region41
    $region40: #{tpu_custom_call.1} parent=1 // pred_region
      _
    $region41: #{tpu_custom_call.1} parent=1 // pred_fallthru
      _
    // Predicated region
    $region42: #{tpu_custom_call.1} parent=1 // pred_check
      _
    $region43: #{tpu_custom_call.1} parent=1 // pred_check_branch
      %823 = sbr.rel (0) target = $region45
    $region44: #{tpu_custom_call.1} parent=1 // pred_region
      _
    $region45: #{tpu_custom_call.1} parent=1 // pred_fallthru
      _
    %824 = vsyncpa [#allocation3], 1
    %825 = vsyncpa [#allocation5], 1

</llo_original>
